<compile_context>
chip_gen: v6e
topology: v6e:2x2x1
jax: 0.10.0
libtpu: 0.0.40
codegen_flags: <defaults>
</compile_context>

<pallas_src>
import functools

import jax
import jax.numpy as jnp
from jax.experimental import pallas as pl
from jax.experimental.pallas import tpu as pltpu


def _round_up(a, m):
    return ((a + m - 1) // m) * m


def _avgpool_affine_kernel(x_ref, pool_ref, wb_ref, o_ref, *, mxu_dtype):
    # x_ref:    (TR, 2*G*W)        flattened input super-rows
    # pool_ref: (2*G*W, G*out_w)   constant pooling matrix (0.25 entries)
    # wb_ref:   (TR, 2)            per-super-row [weight, bias] (f32)
    # o_ref:    (TR, G*out_w)      flattened output super-rows
    a = x_ref[...]
    if mxu_dtype is not None and a.dtype != mxu_dtype:
        # bf16 MXU fast path: 0.25/0.0 pool entries are exact in bf16; only the
        # activations lose ~2^-9 relative precision. Accumulation stays f32.
        a = a.astype(mxu_dtype)
    pooled = jnp.dot(a, pool_ref[...], preferred_element_type=jnp.float32)
    wb = wb_ref[...]
    w = wb[:, 0:1]
    b = wb[:, 1:2]
    o_ref[...] = (w * pooled + b).astype(o_ref.dtype)


def avg_pooling_layer(x, weight, bias, *,
                      target_lanes=128,
                      mxu_dtype=None,
                      vmem_budget_bytes=28 * 1024 * 1024,
                      vmem_limit_bytes=48 * 1024 * 1024):
    """x: (B, C, H, W) float; weight/bias: (C,). Returns (B, C, H//2, W//2)."""
    B, C, H, W = x.shape
    assert jnp.issubdtype(x.dtype, jnp.floating), \
        "avg_pooling_layer requires a floating-point input dtype"
    assert H % 2 == 0 and W % 2 == 0, "input spatial size must be divisible by 2"
    assert weight.shape == (C,) and bias.shape == (C,)
    out_h, out_w = H // 2, W // 2

    # Row-pair group G: pack G output rows per super-row so the stored lane
    # width G*out_w approaches >=128 (dense vst, full MXU N-dim), while keeping
    # each super-row inside a single channel (G divides out_h).
    G = 1
    while (out_h % (2 * G) == 0) and (G * out_w < target_lanes):
        G *= 2
    # TODO(synk): tiny images can still end with G*out_w < 128 (masked stores);
    # a multi-channel super-row with per-lane-block affine would fix it, but
    # tiny images are not the perf target of this kernel.

    lanes_in = 2 * G * W
    lanes_out = G * out_w
    N = (B * C * out_h) // G          # number of super-rows

    # Free view of the contiguous NCHW buffer: each super-row is G consecutive
    # (row 2k, row 2k+1) pooling pairs of one channel image.
    x2 = x.reshape(N, lanes_in)

    # Constant pooling matrix: input column p of a super-row contributes with
    # weight 0.25 to output column (p // (2W)) * out_w + (p % W) // 2.
    compute_dtype = jnp.dtype(mxu_dtype) if mxu_dtype is not None else x.dtype
    p = jnp.arange(lanes_in)
    q = (p // (2 * W)) * out_w + (p % W) // 2
    pool = jnp.where(q[:, None] == jnp.arange(lanes_out)[None, :],
                     jnp.asarray(0.25, dtype=compute_dtype),
                     jnp.asarray(0.0, dtype=compute_dtype))

    # Per-super-row [weight, bias]; channel is constant within a super-row.
    # NOTE: the (tr, 2) tile lane-pads to 128 lanes (512 B/row/buffer); kept
    # because it avoids an in-kernel lane->sublane transpose, and it is counted
    # in the VMEM budget below.
    rows_per_chan = out_h // G
    chan = (jnp.arange(N) // rows_per_chan) % C
    wb = jnp.stack([weight[chan], bias[chan]], axis=1).astype(jnp.float32)

    itemsize = x.dtype.itemsize
    sublane = max(8, 8 * (4 // itemsize))   # 8 f32 / 16 bf16 / 32 int8

    # VMEM accounting (v7x-safe): double-buffered x/out/wb tiles + the
    # double-buffered constant pool (its block index never changes, so it is
    # only fetched once from HBM, but the second buffer still occupies VMEM).
    # TODO(synk): single-buffer the pool (pl.Buffered(1)) and/or tile the K /
    # lane dims of the pooling matmul for very large W.
    pool_bytes = pool.size * pool.dtype.itemsize
    fixed_bytes = 2 * pool_bytes + (1 << 20)              # + 1 MiB slack
    per_row_bytes = 2 * ((lanes_in + lanes_out) * itemsize + 128 * 4)
    avail = vmem_budget_bytes - fixed_bytes
    assert avail >= per_row_bytes * sublane, (
        "pooling matrix too large for the VMEM budget; tile the lane/K "
        "dimensions of the pooling matmul for this image size")

    if N <= sublane:
        tr = N                               # single full-extent block
    else:
        tr = avail // per_row_bytes
        tr = max(sublane, (tr // sublane) * sublane)
        tr = min(tr, _round_up(N, sublane))
        # v7x: keep >= 2 (even number of) grid steps so the "parallel" grid
        # axis shards across both TensorCores without imbalance.
        steps = max(2, pl.cdiv(N, tr))
        if steps % 2:
            steps += 1
        tr = min(tr, max(sublane, _round_up(pl.cdiv(N, steps), sublane)))
    grid = (pl.cdiv(N, tr),)

    out_bytes = N * lanes_out * itemsize
    cost = pl.CostEstimate(
        flops=2 * N * lanes_in * lanes_out + 2 * N * lanes_out,
        transcendentals=0,
        bytes_accessed=x2.size * itemsize + out_bytes + wb.size * 4 + pool_bytes,
    )

    kernel = functools.partial(
        _avgpool_affine_kernel,
        mxu_dtype=None if compute_dtype == x.dtype else compute_dtype)

    out_flat = pl.pallas_call(
        kernel,
        out_shape=jax.ShapeDtypeStruct((N, lanes_out), x.dtype),
        grid_spec=pltpu.PrefetchScalarGridSpec(
            num_scalar_prefetch=0,
            grid=grid,
            in_specs=[
                pl.BlockSpec((tr, lanes_in), lambda i: (i, 0)),
                pl.BlockSpec((lanes_in, lanes_out), lambda i: (0, 0)),
                pl.BlockSpec((tr, 2), lambda i: (i, 0)),
            ],
            out_specs=pl.BlockSpec((tr, lanes_out), lambda i: (i, 0)),
        ),
        compiler_params=pltpu.CompilerParams(
            dimension_semantics=("parallel",),
            vmem_limit_bytes=vmem_limit_bytes,
        ),
        cost_estimate=cost,
    )(x2, pool, wb)

    # Free view back to NCHW.
    return out_flat.reshape(B, C, out_h, out_w)


def reference(x, weight, bias):
    B, C, H, W = x.shape
    pooled = x.reshape(B, C, H // 2, 2, W // 2, 2).mean(axis=(3, 5))
    return weight.reshape(1, C, 1, 1) * pooled + bias.reshape(1, C, 1, 1)


if __name__ == "__main__":
    key = jax.random.PRNGKey(0)

    # Default (full f32) path: tight tolerance, matches the PyTorch module.
    for (Bs, Cs, Hs, Ws) in [(2, 4, 16, 16), (2, 3, 16, 16), (2, 4, 32, 32)]:
        key, kx, kw, kb = jax.random.split(key, 4)
        x = jax.random.normal(kx, (Bs, Cs, Hs, Ws), dtype=jnp.float32)
        weight = jax.random.normal(kw, (Cs,), dtype=jnp.float32)
        bias = jax.random.normal(kb, (Cs,), dtype=jnp.float32)

        out = jax.block_until_ready(avg_pooling_layer(x, weight, bias))
        ref = reference(x, weight, bias)
        assert out.shape == (Bs, Cs, Hs // 2, Ws // 2)
        assert jnp.allclose(out, ref, atol=1e-5, rtol=1e-5), \
            f"mismatch vs reference for shape {(Bs, Cs, Hs, Ws)}"

    # bf16-MXU fast path (perf review): looser tolerance (~bf16 relative error).
    key, kx, kw, kb = jax.random.split(key, 4)
    x = jax.random.normal(kx, (2, 4, 32, 32), dtype=jnp.float32)
    weight = jax.random.normal(kw, (4,), dtype=jnp.float32)
    bias = jax.random.normal(kb, (4,), dtype=jnp.float32)
    out = jax.block_until_ready(
        avg_pooling_layer(x, weight, bias, mxu_dtype=jnp.bfloat16))
    ref = reference(x, weight, bias)
    assert jnp.allclose(out, ref, atol=5e-2, rtol=5e-2), "bf16 MXU path mismatch"

    print("KERNEL_OK")
</pallas_src>

<mosaic_0001>
module attributes {stable_mosaic.version = 11 : i64} {
  func.func @_avgpool_affine_kernel(%arg0: i32, %arg1: memref<8x256xf32, #tpu.memory_space<vmem>>, %arg2: memref<256x64xf32, #tpu.memory_space<vmem>>, %arg3: memref<8x2xf32, #tpu.memory_space<vmem>>, %arg4: memref<8x64xf32, #tpu.memory_space<vmem>>) attributes {dimension_semantics = [#tpu.dimension_semantics<parallel>], iteration_bounds = array<i64: 1>, scalar_prefetch = 0 : i64, scratch_operands = 0 : i64, tpu.core_type = #tpu.core_type<tc>, window_params = [{transform_indices = @transform_0, window_bounds = array<i64: 8, 256>}, {pipeline_mode = #tpu.pipeline_mode<synchronous>, transform_indices = @transform_1, window_bounds = array<i64: 256, 64>}, {transform_indices = @transform_2, window_bounds = array<i64: 8, 2>}, {transform_indices = @transform_3, window_bounds = array<i64: 8, 64>}]} {
    %c0 = arith.constant 0 : index
    %c0_0 = arith.constant 0 : index
    %0 = vector.load %arg1[%c0, %c0_0] : memref<8x256xf32, #tpu.memory_space<vmem>>, vector<8x256xf32>
    %c0_1 = arith.constant 0 : index
    %c0_2 = arith.constant 0 : index
    %1 = vector.load %arg2[%c0_1, %c0_2] : memref<256x64xf32, #tpu.memory_space<vmem>>, vector<256x64xf32>
    %cst = arith.constant dense<0.000000e+00> : vector<8x64xf32>
    %2 = tpu.matmul %0, %1, %cst {dimension_numbers = #tpu.dot_dimension_numbers<[1], [0], [0], [1], [0, 0, 1, 1], [], []>} : vector<8x256xf32>, vector<256x64xf32>, vector<8x64xf32> -> vector<8x64xf32>
    %c0_3 = arith.constant 0 : index
    %c0_4 = arith.constant 0 : index
    %3 = vector.load %arg3[%c0_3, %c0_4] : memref<8x2xf32, #tpu.memory_space<vmem>>, vector<8x2xf32>
    %4 = vector.extract_strided_slice %3 {offsets = [0, 0], sizes = [8, 1], strides = [1, 1]} : vector<8x2xf32> to vector<8x1xf32>
    %5 = vector.extract_strided_slice %3 {offsets = [0, 1], sizes = [8, 1], strides = [1, 1]} : vector<8x2xf32> to vector<8x1xf32>
    %6 = vector.broadcast %4 : vector<8x1xf32> to vector<8x64xf32>
    %7 = arith.mulf %6, %2 : vector<8x64xf32>
    %8 = vector.broadcast %5 : vector<8x1xf32> to vector<8x64xf32>
    %9 = arith.addf %7, %8 : vector<8x64xf32>
    %c0_5 = arith.constant 0 : index
    %c0_6 = arith.constant 0 : index
    %10 = vector.load %arg4[%c0_5, %c0_6] : memref<8x64xf32, #tpu.memory_space<vmem>>, vector<8x64xf32>
    tpu.vector_store %arg4[%c0_5, %c0_6], %9 {strides = array<i32>} : memref<8x64xf32, #tpu.memory_space<vmem>>, vector<8x64xf32>,
    return
  }
  func.func @transform_0(%arg0: i32) -> (i32, i32) {
    %c0_i32 = arith.constant 0 : i32
    %c0_i32_0 = arith.constant 0 : i32
    return %arg0, %c0_i32 : i32, i32
  }
  func.func @transform_1(%arg0: i32) -> (i32, i32) {
    %c0_i32 = arith.constant 0 : i32
    %c0_i32_0 = arith.constant 0 : i32
    %c0_i32_1 = arith.constant 0 : i32
    return %c0_i32, %c0_i32_0 : i32, i32
  }
  func.func @transform_2(%arg0: i32) -> (i32, i32) {
    %c0_i32 = arith.constant 0 : i32
    %c0_i32_0 = arith.constant 0 : i32
    return %arg0, %c0_i32 : i32, i32
  }
  func.func @transform_3(%arg0: i32) -> (i32, i32) {
    %c0_i32 = arith.constant 0 : i32
    %c0_i32_0 = arith.constant 0 : i32
    return %arg0, %c0_i32 : i32, i32
  }
}

</mosaic_0001>

<llo_original>
// kernel: tpu_custom_call.1
$region0: #{tpu_custom_call.1}
  #allocation0 [shape = 'u32[]', space=smem, size = 0x4, offset = 0x4, fixed_abs, tag = 'smem constant byte address 0x4 - core index']
  #allocation1 [shape = 'u32[144,128]{1,0:T(1,128)}', space=vmem, size = 0x12000, scoped, tag = 'internal scratch']
  %s0 = inlined_call_operand.vmem [shape: f32[8,256], index: 0, kind: input, shape index: {}]
  %s1 = inlined_call_operand.vmem [shape: f32[256,64], index: 1, kind: input, shape index: {}]
  %s2 = inlined_call_operand.vmem [shape: f32[8,2], index: 2, kind: input, shape index: {}]
  %s3 = inlined_call_operand.hbm [shape: f32[8,64], index: 3, kind: output, shape index: {}]
  %s4 = sld [smem:[#allocation0]]
  $region22: #{tpu_custom_call.1} parent=0
    _
  %s6 = ssub.s32 1, %s4
  %s7 = scalar_select 0, %s6, %s4
  $region1: #{tpu_custom_call.1} parent=0
    #allocation2 [shape = 'u8[4096]{0}', space=vmem, size = 0x1000, scoped, tag = 'output window, operand 0, single buffered']
    #allocation3 [shape = 's32[1]{0}', space=sflag, size = 0x4, scoped, tag = 'scoped memory for tpu_custom_call.1']
    %8 = vsyncpa [#allocation3], 0
    // Predicated region
    $region2: #{tpu_custom_call.1} parent=1 // pred_check
      _
    $region3: #{tpu_custom_call.1} parent=1 // pred_check_branch
      %10 = sbr.rel (0) target = $region5
    $region4: #{tpu_custom_call.1} parent=1 // pred_region
      _
    $region5: #{tpu_custom_call.1} parent=1 // pred_fallthru
      _
    // Predicated region
    $region6: #{tpu_custom_call.1} parent=1 // pred_check
      _
    $region7: #{tpu_custom_call.1} parent=1 // pred_check_branch
      %12 = sbr.rel (0) target = $region9
    $region8: #{tpu_custom_call.1} parent=1 // pred_region
      _
    $region9: #{tpu_custom_call.1} parent=1 // pred_fallthru
      _
    // Predicated region
    $region10: #{tpu_custom_call.1} parent=1 // pred_check
      _
    $region11: #{tpu_custom_call.1} parent=1 // pred_check_branch
      %14 = sbr.rel (0) target = $region13
    $region12: #{tpu_custom_call.1} parent=1 // pred_region
      _
    $region13: #{tpu_custom_call.1} parent=1 // pred_fallthru
      _
    %v15 = vld [vmem:[%s0] sm:$0xff]
    %v16 = vld [vmem:[%s0 + $0x8] sm:$0xff]
    %v17 = vld [vmem:[%s1] sm:$0xff]
    %v18 = vld [vmem:[%s1 + $0x8] sm:$0xff]
    %v19 = vld [vmem:[%s1 + $0x10] sm:$0xff]
    %v20 = vld [vmem:[%s1 + $0x18] sm:$0xff]
    %v21 = vld [vmem:[%s1 + $0x20] sm:$0xff]
    %v22 = vld [vmem:[%s1 + $0x28] sm:$0xff]
    %v23 = vld [vmem:[%s1 + $0x30] sm:$0xff]
    %v24 = vld [vmem:[%s1 + $0x38] sm:$0xff]
    %v25 = vld [vmem:[%s1 + $0x40] sm:$0xff]
    %v26 = vld [vmem:[%s1 + $0x48] sm:$0xff]
    %v27 = vld [vmem:[%s1 + $0x50] sm:$0xff]
    %v28 = vld [vmem:[%s1 + $0x58] sm:$0xff]
    %v29 = vld [vmem:[%s1 + $0x60] sm:$0xff]
    %v30 = vld [vmem:[%s1 + $0x68] sm:$0xff]
    %v31 = vld [vmem:[%s1 + $0x70] sm:$0xff]
    %v32 = vld [vmem:[%s1 + $0x78] sm:$0xff]
    %v33 = vld [vmem:[%s1 + $0x80] sm:$0xff]
    %v34 = vld [vmem:[%s1 + $0x88] sm:$0xff]
    %v35 = vld [vmem:[%s1 + $0x90] sm:$0xff]
    %v36 = vld [vmem:[%s1 + $0x98] sm:$0xff]
    %v37 = vld [vmem:[%s1 + $0xa0] sm:$0xff]
    %v38 = vld [vmem:[%s1 + $0xa8] sm:$0xff]
    %v39 = vld [vmem:[%s1 + $0xb0] sm:$0xff]
    %v40 = vld [vmem:[%s1 + $0xb8] sm:$0xff]
    %v41 = vld [vmem:[%s1 + $0xc0] sm:$0xff]
    %v42 = vld [vmem:[%s1 + $0xc8] sm:$0xff]
    %v43 = vld [vmem:[%s1 + $0xd0] sm:$0xff]
    %v44 = vld [vmem:[%s1 + $0xd8] sm:$0xff]
    %v45 = vld [vmem:[%s1 + $0xe0] sm:$0xff]
    %v46 = vld [vmem:[%s1 + $0xe8] sm:$0xff]
    %v47 = vld [vmem:[%s1 + $0xf0] sm:$0xff]
    %v48 = vld [vmem:[%s1 + $0xf8] sm:$0xff]
    %49 = vmatprep.subr.mxu0 0.0
    %50 = vmatpush1.msra.mxu0 %v32
    %51 = vmatprep.subr.mxu0 0.0
    %52 = vmatpush1.msra.mxu0 %v31
    %53 = vmatprep.subr.mxu0 0.0
    %54 = vmatpush1.msra.mxu0 %v30
    %55 = vmatprep.subr.mxu0 0.0
    %56 = vmatpush1.msra.mxu0 %v29
    %57 = vmatprep.subr.mxu0 0.0
    %58 = vmatpush1.msra.mxu0 %v28
    %59 = vmatprep.subr.mxu0 0.0
    %60 = vmatpush1.msra.mxu0 %v27
    %61 = vmatprep.subr.mxu0 0.0
    %62 = vmatpush1.msra.mxu0 %v26
    %63 = vmatprep.subr.mxu0 0.0
    %64 = vmatpush1.msra.mxu0 %v25
    %65 = vmatprep.subr.mxu0 0.0
    %66 = vmatpush1.msra.mxu0 %v24
    %67 = vmatprep.subr.mxu0 0.0
    %68 = vmatpush1.msra.mxu0 %v23
    %69 = vmatprep.subr.mxu0 0.0
    %70 = vmatpush1.msra.mxu0 %v22
    %71 = vmatprep.subr.mxu0 0.0
    %72 = vmatpush1.msra.mxu0 %v21
    %73 = vmatprep.subr.mxu0 0.0
    %74 = vmatpush1.msra.mxu0 %v20
    %75 = vmatprep.subr.mxu0 0.0
    %76 = vmatpush1.msra.mxu0 %v19
    %77 = vmatprep.subr.mxu0 0.0
    %78 = vmatpush1.msra.mxu0 %v18
    %79 = vmatprep.subr.mxu0 0.0
    %80 = vmatpush1.msra.mxu0 %v17
    %81 = vmatprep.subr.mxu0 0.0
    %82 = vmatpush2.msra.mxu0 %v48
    %83 = vmatprep.subr.mxu0 0.0
    %84 = vmatpush2.msra.mxu0 %v47
    %85 = vmatprep.subr.mxu0 0.0
    %86 = vmatpush2.msra.mxu0 %v46
    %87 = vmatprep.subr.mxu0 0.0
    %88 = vmatpush2.msra.mxu0 %v45
    %89 = vmatprep.subr.mxu0 0.0
    %90 = vmatpush2.msra.mxu0 %v44
    %91 = vmatprep.subr.mxu0 0.0
    %92 = vmatpush2.msra.mxu0 %v43
    %93 = vmatprep.subr.mxu0 0.0
    %94 = vmatpush2.msra.mxu0 %v42
    %95 = vmatprep.subr.mxu0 0.0
    %96 = vmatpush2.msra.mxu0 %v41
    %97 = vmatprep.subr.mxu0 0.0
    %98 = vmatpush2.msra.mxu0 %v40
    %99 = vmatprep.subr.mxu0 0.0
    %100 = vmatpush2.msra.mxu0 %v39
    %101 = vmatprep.subr.mxu0 0.0
    %102 = vmatpush2.msra.mxu0 %v38
    %103 = vmatprep.subr.mxu0 0.0
    %104 = vmatpush2.msra.mxu0 %v37
    %105 = vmatprep.subr.mxu0 0.0
    %106 = vmatpush2.msra.mxu0 %v36
    %107 = vmatprep.subr.mxu0 0.0
    %108 = vmatpush2.msra.mxu0 %v35
    %109 = vmatprep.subr.mxu0 0.0
    %110 = vmatpush2.msra.mxu0 %v34
    %111 = vmatprep.subr.mxu0 0.0
    %112 = vmatpush2.msra.mxu0 %v33
    %113 = vmatprep.mubr.f32.mxu0 %v16
    %114 = vmatmul.mubr.f32.gmra.mxu0 %v15
    %v115 = vpop.f32.mrf.mxu0
    %v116 = vadd.f32 0.0, %v115
    %v117 = vpop.f32.mrf.mxu0
    %118 = vdwg.mxu0
    %v119 = vld [vmem:[%s2] sm:$0xff]
    %121 = vset.pattern.permute.xlu0 0
    %122 = vperm.xlu0 %121, %v119
    %v123 = vpop.permute.xlu0 %122
    %v125 = vmul.f32 %v123, %v116
    %126 = vset.pattern.permute.xlu0 1
    %127 = vperm.xlu0 %126, %v119
    %v128 = vpop.permute.xlu0 %127
    %v130 = vadd.f32 %v125, %v128
    %vm131 = vcmask 523264
    %132 = vst.msk [vmem:[#allocation2] sm:$0xff] %vm131, %v130
    // Predicated region
    $region14: #{tpu_custom_call.1} parent=1 // pred_check
      _
    $region15: #{tpu_custom_call.1} parent=1 // pred_check_branch
      %134 = sbr.rel (0) target = $region17
    $region16: #{tpu_custom_call.1} parent=1 // pred_region
      %s136 = ssub.s32 128, 128
      %137 = vsyncadd [#allocation3], %s136
      %s139 = sshll.u32 [#allocation2], 4
      %s140 = int_to_ptr.vmem [resolvable:$true] %s139
      %142 = dma.vmem_to_hbm [thread:$0]  %s140, 128, %s3, [#allocation3]
    $region17: #{tpu_custom_call.1} parent=1 // pred_fallthru
      _
    // Predicated region
    $region18: #{tpu_custom_call.1} parent=1 // pred_check
      _
    $region19: #{tpu_custom_call.1} parent=1 // pred_check_branch
      %144 = sbr.rel (0) target = $region21
    $region20: #{tpu_custom_call.1} parent=1 // pred_region
      %145 = dma.done [#allocation3], 128
    $region21: #{tpu_custom_call.1} parent=1 // pred_fallthru
      _
    %146 = vsyncpa [#allocation3], 1

</llo_original>
